<compile_context>
chip_gen: v6e
topology: v6e:2x2x1
jax: 0.10.0
libtpu: 0.0.40
codegen_flags: <defaults>
</compile_context>

<pallas_src>
import functools

import jax
import jax.numpy as jnp
from jax import lax
from jax.experimental import pallas as pl
from jax.experimental.pallas import tpu as pltpu


def _default_vmem_limit():
    """Generation-aware scoped-VMEM budget (big on 128 MiB parts, tight on v7x)."""
    try:
        cap = int(pltpu.get_tpu_info().vmem_capacity_bytes)
    except Exception:
        cap = 64 * 1024 * 1024
    return max(32 * 1024 * 1024, min(cap * 3 // 4, 100 * 1024 * 1024))


_VMEM_LIMIT = _default_vmem_limit()


def _pick_tile_s(S, cap=None):
    """Largest divisor of S that is <= cap and a multiple of 8 (else S itself)."""
    if cap is None:
        cap = 4096 if _VMEM_LIMIT >= 80 * 1024 * 1024 else 2048
    if S <= cap:
        return S
    for t in range(cap, 7, -1):
        if S % t == 0 and t % 8 == 0:
            return t
    # Fallback: full S keeps the BlockSpec legal (full-dim block) even if large.
    return S


# -----------------------------------------------------------------------------
# GroupNorm statistics: per-S-tile partial sums (fully parallel grid), folded in
# the wrapper. Used only for norm1; norm2 stats come fused out of conv1.
# -----------------------------------------------------------------------------
def _gn_stats_kernel(x_ref, sum_ref, sq_ref):
    x = x_ref[...].astype(jnp.float32)                    # (tile_s, C)
    sum_ref[0] = jnp.sum(x, axis=0, keepdims=True)        # (1, C) partial
    sq_ref[0] = jnp.sum(x * x, axis=0, keepdims=True)


def _groupnorm_stats(x_bsc, *, tile_s):
    B, S, C = x_bsc.shape
    n_s = S // tile_s
    sums, sqs = pl.pallas_call(
        _gn_stats_kernel,
        out_shape=(jax.ShapeDtypeStruct((n_s, B, 1, C), jnp.float32),
                   jax.ShapeDtypeStruct((n_s, B, 1, C), jnp.float32)),
        grid=(B, n_s),
        in_specs=[pl.BlockSpec((None, tile_s, C), lambda b, s: (b, s, 0))],
        out_specs=(pl.BlockSpec((None, 1, 1, C), lambda b, s: (s, b, 0, 0)),
                   pl.BlockSpec((None, 1, 1, C), lambda b, s: (s, b, 0, 0))),
        compiler_params=pltpu.CompilerParams(
            dimension_semantics=("parallel", "parallel"),
            vmem_limit_bytes=_VMEM_LIMIT),
    )(x_bsc)
    # tiny (n_s, B, C) reduction in XLA
    return sums.sum(axis=0)[:, 0, :], sqs.sum(axis=0)[:, 0, :]    # (B, C) each


def _fold_groupnorm(ch_sum, ch_sq, count, gamma, beta, *, num_groups, eps):
    """Per-(batch, channel) scale/shift so GN(x)*gamma+beta == x*scale + shift.

    Variance via E[x^2]-E[x]^2 in f32 (same as the validated previous version);
    revisit with a Welford pass if activations are far from zero-centered.
    """
    B, C = ch_sum.shape
    G = num_groups
    cg = C // G
    cnt = jnp.float32(count * cg)
    g_sum = ch_sum.reshape(B, G, cg).sum(-1)
    g_sq = ch_sq.reshape(B, G, cg).sum(-1)
    mean = g_sum / cnt
    var = g_sq / cnt - mean * mean
    rstd = lax.rsqrt(var + eps)
    mean_c = jnp.repeat(mean, cg, axis=-1)                # (B, C)
    rstd_c = jnp.repeat(rstd, cg, axis=-1)
    scale = rstd_c * gamma[None, :]
    shift = beta[None, :] - mean_c * scale
    return (scale.reshape(B, 1, C).astype(jnp.float32),
            shift.reshape(B, 1, C).astype(jnp.float32))


# -----------------------------------------------------------------------------
# In-kernel conv helpers: bf16 halo scratch (border-only zeroing) + per-tap MXU
# accumulation (no materialized im2col patch, no concatenates).
# -----------------------------------------------------------------------------
def _fill_padded(pad_ref, y_bf16, H, W):
    C = pad_ref.shape[-1]
    dt = pad_ref.dtype
    zrow = jnp.zeros((1, W + 2, C), dt)
    zcol = jnp.zeros((H, 1, C), dt)
    pad_ref[0:1, :, :] = zrow
    pad_ref[H + 1:H + 2, :, :] = zrow
    pad_ref[1:H + 1, 0:1, :] = zcol
    pad_ref[1:H + 1, W + 1:W + 2, :] = zcol
    pad_ref[1:H + 1, 1:W + 1, :] = y_bf16.astype(dt)


def _conv3x3_acc(pad_ref, w_ref, H, W, C):
    """3x3 conv as 9 per-tap MXU matmuls accumulated in f32."""
    acc = None
    k = 0
    for dy in range(3):
        for dx in range(3):
            tap = pad_ref[dy:dy + H, dx:dx + W, :].reshape(H * W, C)
            part = jnp.dot(tap, w_ref[k * C:(k + 1) * C, :],
                           preferred_element_type=jnp.float32)
            acc = part if acc is None else acc + part
            k += 1
    return acc                                            # (H*W, Cout) f32


# -----------------------------------------------------------------------------
# Fused kernel 1: GN affine + SiLU + conv3x3 + bias + temb, plus norm2 statistics
# -----------------------------------------------------------------------------
def _conv1_kernel(x_ref, sc_ref, sh_ref, w_ref, b_ref, t_ref,
                  o_ref, hsum_ref, hsq_ref, pad_ref, *, H, W, Cin, Cout):
    x = x_ref[...].astype(jnp.float32)                    # (H, W, Cin)
    sc = sc_ref[...].reshape(1, 1, Cin)
    sh = sh_ref[...].reshape(1, 1, Cin)
    y = x * sc + sh                                       # fused GroupNorm affine
    y = y * jax.nn.sigmoid(y)                             # SiLU
    _fill_padded(pad_ref, y.astype(jnp.bfloat16), H, W)
    h = _conv3x3_acc(pad_ref, w_ref, H, W, Cin)           # (H*W, Cout) f32
    h = h + b_ref[...] + t_ref[...]                       # bias + time embedding
    # fused per-frame norm2 statistics (group fold happens in the wrapper)
    hsum_ref[...] = jnp.sum(h, axis=0, keepdims=True)
    hsq_ref[...] = jnp.sum(h * h, axis=0, keepdims=True)
    o_ref[...] = h.reshape(H, W, Cout).astype(o_ref.dtype)


def conv1_fused(x_nhwc, scale, shift, w, b, t, *, frames, out_dtype=jnp.bfloat16):
    N, H, W_, Cin = x_nhwc.shape
    Cout = w.shape[-1]
    F = frames
    w9 = w.reshape(9 * Cin, Cout).astype(jnp.bfloat16)
    b2 = b.reshape(1, Cout).astype(jnp.float32)
    kernel = functools.partial(_conv1_kernel, H=H, W=W_, Cin=Cin, Cout=Cout)
    return pl.pallas_call(
        kernel,
        out_shape=(jax.ShapeDtypeStruct((N, H, W_, Cout), out_dtype),
                   jax.ShapeDtypeStruct((N, 1, Cout), jnp.float32),
                   jax.ShapeDtypeStruct((N, 1, Cout), jnp.float32)),
        grid=(N,),
        in_specs=[
            pl.BlockSpec((None, H, W_, Cin), lambda n: (n, 0, 0, 0)),
            pl.BlockSpec((None, 1, Cin), lambda n: (n // F, 0, 0)),
            pl.BlockSpec((None, 1, Cin), lambda n: (n // F, 0, 0)),
            pl.BlockSpec((9 * Cin, Cout), lambda n: (0, 0)),
            pl.BlockSpec((1, Cout), lambda n: (0, 0)),
            pl.BlockSpec((None, 1, Cout), lambda n: (n // F, 0, 0)),
        ],
        out_specs=(pl.BlockSpec((None, H, W_, Cout), lambda n: (n, 0, 0, 0)),
                   pl.BlockSpec((None, 1, Cout), lambda n: (n, 0, 0)),
                   pl.BlockSpec((None, 1, Cout), lambda n: (n, 0, 0))),
        scratch_shapes=[pltpu.VMEM((H + 2, W_ + 2, Cin), jnp.bfloat16)],
        compiler_params=pltpu.CompilerParams(
            dimension_semantics=("parallel",), vmem_limit_bytes=_VMEM_LIMIT),
    )(x_nhwc, scale, shift, w9, b2, t)


# -----------------------------------------------------------------------------
# Fused kernel 2: GN affine + SiLU + conv3x3 + bias + (1x1 shortcut) + residual
# -----------------------------------------------------------------------------
def _conv2_kernel(h_ref, sc_ref, sh_ref, w_ref, b_ref, r_ref, o_ref, pad_ref, *,
                  H, W, C, Cout, inv_scale):
    h = h_ref[...].astype(jnp.float32)
    y = h * sc_ref[...].reshape(1, 1, C) + sh_ref[...].reshape(1, 1, C)
    y = y * jax.nn.sigmoid(y)
    _fill_padded(pad_ref, y.astype(jnp.bfloat16), H, W)
    acc = _conv3x3_acc(pad_ref, w_ref, H, W, C) + b_ref[...]
    res = r_ref[...].astype(jnp.float32).reshape(H * W, Cout)
    o_ref[...] = ((res + acc) * inv_scale).reshape(H, W, Cout).astype(o_ref.dtype)


def _conv2_shortcut_kernel(h_ref, sc_ref, sh_ref, w_ref, b_ref, r_ref, sw_ref, sb_ref,
                           o_ref, pad_ref, *, H, W, C, Cout, Cres, inv_scale):
    h = h_ref[...].astype(jnp.float32)
    y = h * sc_ref[...].reshape(1, 1, C) + sh_ref[...].reshape(1, 1, C)
    y = y * jax.nn.sigmoid(y)
    _fill_padded(pad_ref, y.astype(jnp.bfloat16), H, W)
    acc = _conv3x3_acc(pad_ref, w_ref, H, W, C) + b_ref[...]
    # fused 1x1 conv_shortcut on the original x tile (rides the same MXU slot)
    xr = r_ref[...].astype(jnp.bfloat16).reshape(H * W, Cres)
    res = jnp.dot(xr, sw_ref[...], preferred_element_type=jnp.float32) + sb_ref[...]
    o_ref[...] = ((res + acc) * inv_scale).reshape(H, W, Cout).astype(o_ref.dtype)


def conv2_fused(h_nhwc, scale, shift, w, b, res_nhwc, short_w=None, short_b=None, *,
                frames, inv_scale=1.0, out_dtype=jnp.float32):
    N, H, W_, C = h_nhwc.shape
    Cout = w.shape[-1]
    Cres = res_nhwc.shape[-1]
    F = frames
    w9 = w.reshape(9 * C, Cout).astype(jnp.bfloat16)
    b2 = b.reshape(1, Cout).astype(jnp.float32)

    in_specs = [
        pl.BlockSpec((None, H, W_, C), lambda n: (n, 0, 0, 0)),
        pl.BlockSpec((None, 1, C), lambda n: (n // F, 0, 0)),
        pl.BlockSpec((None, 1, C), lambda n: (n // F, 0, 0)),
        pl.BlockSpec((9 * C, Cout), lambda n: (0, 0)),
        pl.BlockSpec((1, Cout), lambda n: (0, 0)),
        pl.BlockSpec((None, H, W_, Cres), lambda n: (n, 0, 0, 0)),
    ]
    args = [h_nhwc, scale, shift, w9, b2, res_nhwc]
    if short_w is not None:
        kernel = functools.partial(_conv2_shortcut_kernel, H=H, W=W_, C=C, Cout=Cout,
                                   Cres=Cres, inv_scale=inv_scale)
        in_specs += [pl.BlockSpec((Cres, Cout), lambda n: (0, 0)),
                     pl.BlockSpec((1, Cout), lambda n: (0, 0))]
        args += [short_w.astype(jnp.bfloat16),
                 short_b.reshape(1, Cout).astype(jnp.float32)]
    else:
        kernel = functools.partial(_conv2_kernel, H=H, W=W_, C=C, Cout=Cout,
                                   inv_scale=inv_scale)

    return pl.pallas_call(
        kernel,
        out_shape=jax.ShapeDtypeStruct((N, H, W_, Cout), out_dtype),
        grid=(N,),
        in_specs=in_specs,
        out_specs=pl.BlockSpec((None, H, W_, Cout), lambda n: (n, 0, 0, 0)),
        scratch_shapes=[pltpu.VMEM((H + 2, W_ + 2, C), jnp.bfloat16)],
        compiler_params=pltpu.CompilerParams(
            dimension_semantics=("parallel",), vmem_limit_bytes=_VMEM_LIMIT),
    )(*args)


# -----------------------------------------------------------------------------
# Downsample: stride-2 3x3 conv. Even/odd padded columns are de-interleaved once
# into a bf16 scratch so every tap read is a dense sublane slab.
# -----------------------------------------------------------------------------
def _down_kernel(x_ref, w_ref, b_ref, o_ref, de_ref, *, H, W, C, Cout, Ho, Wo):
    # de_ref: (H + 2, 2 * (Wo + 1), C) zero-padded frame with columns split as
    #   de[:, 0:Wo+1]        = padded columns 0, 2, ..., W      (even)
    #   de[:, Wo+1:2*(Wo+1)] = padded columns 1, 3, ..., W + 1  (odd)
    E = Wo + 1
    dt = de_ref.dtype
    zrow = jnp.zeros((1, 2 * E, C), dt)
    zcol = jnp.zeros((H, 1, C), dt)
    de_ref[0:1, :, :] = zrow
    de_ref[H + 1:H + 2, :, :] = zrow
    de_ref[1:H + 1, 0:1, :] = zcol                         # padded column 0
    de_ref[1:H + 1, 2 * E - 1:2 * E, :] = zcol             # padded column W + 1
    de_ref[1:H + 1, 1:E, :] = (
        x_ref[pl.ds(0, H), pl.ds(1, Wo, stride=2), :].astype(dt))   # x odd cols
    de_ref[1:H + 1, E:E + Wo, :] = (
        x_ref[pl.ds(0, H), pl.ds(0, Wo, stride=2), :].astype(dt))   # x even cols

    col0 = (0, E, 1)        # dx -> column offset of the dense tap inside de_ref
    acc = None
    k = 0
    for dy in range(3):
        for dx in range(3):
            tap = de_ref[pl.ds(dy, Ho, stride=2), pl.ds(col0[dx], Wo), :]
            part = jnp.dot(tap.reshape(Ho * Wo, C), w_ref[k * C:(k + 1) * C, :],
                           preferred_element_type=jnp.float32)
            acc = part if acc is None else acc + part
            k += 1
    acc = acc + b_ref[...]
    o_ref[...] = acc.reshape(Ho, Wo, Cout).astype(o_ref.dtype)


def down_conv(x_nhwc, w, b):
    N, H, W_, C = x_nhwc.shape
    assert H % 2 == 0 and W_ % 2 == 0, "Downsample3D kernel assumes even H, W"
    Cout = w.shape[-1]
    Ho, Wo = H // 2, W_ // 2
    w9 = w.reshape(9 * C, Cout).astype(jnp.bfloat16)
    b2 = b.reshape(1, Cout).astype(jnp.float32)
    kernel = functools.partial(_down_kernel, H=H, W=W_, C=C, Cout=Cout, Ho=Ho, Wo=Wo)
    return pl.pallas_call(
        kernel,
        out_shape=jax.ShapeDtypeStruct((N, Ho, Wo, Cout), x_nhwc.dtype),
        grid=(N,),
        in_specs=[pl.BlockSpec((None, H, W_, C), lambda n: (n, 0, 0, 0)),
                  pl.BlockSpec((9 * C, Cout), lambda n: (0, 0)),
                  pl.BlockSpec((1, Cout), lambda n: (0, 0))],
        out_specs=pl.BlockSpec((None, Ho, Wo, Cout), lambda n: (n, 0, 0, 0)),
        scratch_shapes=[pltpu.VMEM((H + 2, 2 * (Wo + 1), C), jnp.bfloat16)],
        compiler_params=pltpu.CompilerParams(
            dimension_semantics=("parallel",), vmem_limit_bytes=_VMEM_LIMIT),
    )(x_nhwc, w9, b2)


# -----------------------------------------------------------------------------
# ResnetBlock3D / Downsample3D / DownBlock3D (parameters are plain dicts)
# -----------------------------------------------------------------------------
def resnet_block_3d(params, x, temb, *, groups, eps, output_scale_factor):
    """x: (B, F, H, W, Cin) channels-last -> (B, F, H, W, Cout)."""
    B, F, H, W, Cin = x.shape
    Cout = params["conv1_w"].shape[-1]
    N = B * F
    S = F * H * W
    x_n = x.reshape(N, H, W, Cin)

    # norm1 statistics (fully-parallel partial sums over S tiles) -> (b, c) affine
    ch_sum1, ch_sq1 = _groupnorm_stats(x.reshape(B, S, Cin), tile_s=_pick_tile_s(S))
    sc1, sh1 = _fold_groupnorm(ch_sum1, ch_sq1, S, params["norm1_g"], params["norm1_b"],
                               num_groups=groups, eps=eps)

    # time embedding: Linear(SiLU(temb)) as a tiny plain-XLA matmul -> (B, 1, Cout)
    if temb is not None:
        t = jnp.dot(jax.nn.silu(temb.astype(jnp.float32)),
                    params["temb_w"].astype(jnp.float32)) + params["temb_b"]
    else:
        t = jnp.zeros((B, Cout), jnp.float32)
    t = t.reshape(B, 1, Cout).astype(jnp.float32)

    # fused: norm1 + SiLU + conv1 + bias + temb, plus per-frame norm2 statistics.
    # Intermediate h lives in bf16 between kernels (in-kernel accumulation is f32).
    h, hsum, hsq = conv1_fused(x_n, sc1, sh1, params["conv1_w"], params["conv1_b"], t,
                               frames=F, out_dtype=jnp.bfloat16)

    ch_sum2 = hsum.reshape(B, F, Cout).sum(axis=1)
    ch_sq2 = hsq.reshape(B, F, Cout).sum(axis=1)
    sc2, sh2 = _fold_groupnorm(ch_sum2, ch_sq2, S, params["norm2_g"], params["norm2_b"],
                               num_groups=groups, eps=eps)
    # dropout(p=0.0) is the identity in eval mode

    # fused: norm2 + SiLU + conv2 + bias + (1x1 shortcut) + residual + 1/scale
    out = conv2_fused(h, sc2, sh2, params["conv2_w"], params["conv2_b"], x_n,
                      params.get("short_w"), params.get("short_b"),
                      frames=F, inv_scale=1.0 / output_scale_factor,
                      out_dtype=x.dtype)
    return out.reshape(B, F, H, W, Cout)


def downsample3d(params, x):
    """Conv2d(C, C, 3, stride=2, padding=1) applied per frame."""
    B, F, H, W, C = x.shape
    Cout = params["w"].shape[-1]
    y = down_conv(x.reshape(B * F, H, W, C), params["w"], params["b"])
    return y.reshape(B, F, y.shape[1], y.shape[2], Cout)


def _conv_init(key, kh, kw, cin, cout, scale=0.05):
    kw_, kb = jax.random.split(key)
    w = scale * jax.random.normal(kw_, (kh, kw, cin, cout), jnp.float32)
    b = scale * jax.random.normal(kb, (cout,), jnp.float32)
    return w, b


def init_down_block_3d(key, in_channels, out_channels, temb_channels, *,
                       num_layers=1, groups=8, add_downsample=True):
    params = {"resnets": [], "downsamplers": []}
    keys = jax.random.split(key, num_layers + 1)
    for i in range(num_layers):
        cin = in_channels if i == 0 else out_channels
        ks = jax.random.split(keys[i], 4)
        rp = {}
        rp["norm1_g"] = jnp.ones((cin,), jnp.float32)
        rp["norm1_b"] = jnp.zeros((cin,), jnp.float32)
        rp["conv1_w"], rp["conv1_b"] = _conv_init(ks[0], 3, 3, cin, out_channels)
        tw, tb = _conv_init(ks[1], 1, 1, temb_channels, out_channels)
        rp["temb_w"], rp["temb_b"] = tw.reshape(temb_channels, out_channels), tb
        rp["norm2_g"] = jnp.ones((out_channels,), jnp.float32)
        rp["norm2_b"] = jnp.zeros((out_channels,), jnp.float32)
        rp["conv2_w"], rp["conv2_b"] = _conv_init(ks[2], 3, 3, out_channels, out_channels)
        if cin != out_channels:
            sw, sb = _conv_init(ks[3], 1, 1, cin, out_channels)
            rp["short_w"], rp["short_b"] = sw.reshape(cin, out_channels), sb
        params["resnets"].append(rp)
    if add_downsample:
        dw, db = _conv_init(keys[-1], 3, 3, out_channels, out_channels)
        params["downsamplers"].append({"w": dw, "b": db})
    return params


def down_block_3d(params, hidden_states, temb=None, num_frames=1, *,
                  groups=8, eps=1e-6, output_scale_factor=1.0):
    """hidden_states: (B, C, F, H, W) PyTorch NCDHW; returns NCDHW outputs."""
    del num_frames  # unused, matching the reference forward
    # TODO(synk): if the surrounding network is channels-last, hoist these NCDHW
    # transposes (each is a full HBM round trip of the activation tensor).
    x = jnp.transpose(hidden_states, (0, 2, 3, 4, 1))      # -> (B, F, H, W, C)
    output_states = ()
    for rp in params["resnets"]:
        x = resnet_block_3d(rp, x, temb, groups=groups, eps=eps,
                            output_scale_factor=output_scale_factor)
        output_states += (jnp.transpose(x, (0, 4, 1, 2, 3)),)
    if params["downsamplers"]:
        for dp in params["downsamplers"]:
            x = downsample3d(dp, x)
        output_states += (jnp.transpose(x, (0, 4, 1, 2, 3)),)
    hidden_states = output_states[-1]
    return hidden_states, output_states


if __name__ == "__main__":
    key = jax.random.PRNGKey(0)
    B, Cin, Cout, F, H, W, Tc = 2, 16, 32, 2, 16, 16, 32
    groups = 8

    k_x, k_t, k_p = jax.random.split(key, 3)
    x = jax.random.normal(k_x, (B, Cin, F, H, W), jnp.float32)   # NCDHW like PyTorch
    temb = jax.random.normal(k_t, (B, Tc), jnp.float32)

    params = init_down_block_3d(k_p, Cin, Cout, Tc, num_layers=1, groups=groups,
                                add_downsample=True)

    out, states = down_block_3d(params, x, temb, num_frames=F,
                                groups=groups, eps=1e-6, output_scale_factor=1.0)
    out = jax.block_until_ready(out)
    states = tuple(jax.block_until_ready(s) for s in states)

    assert out.shape == (B, Cout, F, H // 2, W // 2)
    assert states[0].shape == (B, Cout, F, H, W)
    assert states[1].shape == (B, Cout, F, H // 2, W // 2)
    assert all(bool(jnp.all(jnp.isfinite(s))) for s in states)
    print("KERNEL_OK")
</pallas_src>

<mosaic_0001>
module attributes {stable_mosaic.version = 11 : i64} {
  func.func @_gn_stats_kernel(%arg0: i32, %arg1: i32, %arg2: memref<1x512x16xf32, #tpu.memory_space<vmem>>, %arg3: memref<1x1x1x16xf32, #tpu.memory_space<vmem>>, %arg4: memref<1x1x1x16xf32, #tpu.memory_space<vmem>>) attributes {dimension_semantics = [#tpu.dimension_semantics<parallel>, #tpu.dimension_semantics<parallel>], iteration_bounds = array<i64: 2, 1>, scalar_prefetch = 0 : i64, scratch_operands = 0 : i64, tpu.core_type = #tpu.core_type<tc>, window_params = [{transform_indices = @transform_0, window_bounds = array<i64: 1, 512, 16>}, {transform_indices = @transform_1, window_bounds = array<i64: 1, 1, 1, 16>}, {transform_indices = @transform_2, window_bounds = array<i64: 1, 1, 1, 16>}]} {
    %c0 = arith.constant 0 : index
    %c0_0 = arith.constant 0 : index
    %c0_1 = arith.constant 0 : index
    %0 = vector.load %arg2[%c0, %c0_0, %c0_1] : memref<1x512x16xf32, #tpu.memory_space<vmem>>, vector<1x512x16xf32>
    %1 = vector.shape_cast %0 : vector<1x512x16xf32> to vector<512x16xf32>
    %cst = arith.constant dense<0.000000e+00> : vector<16xf32>
    %2 = vector.multi_reduction <add>, %1, %cst [0] : vector<512x16xf32> to vector<16xf32>
    %3 = vector.shape_cast %2 : vector<16xf32> to vector<1x16xf32>
    %c0_2 = arith.constant 0 : index
    %c0_3 = arith.constant 0 : index
    %c0_4 = arith.constant 0 : index
    %c0_5 = arith.constant 0 : index
    %4 = vector.load %arg3[%c0_2, %c0_3, %c0_4, %c0_5] : memref<1x1x1x16xf32, #tpu.memory_space<vmem>>, vector<1x1x1x16xf32>
    %5 = vector.shape_cast %4 : vector<1x1x1x16xf32> to vector<1x16xf32>
    %6 = vector.shape_cast %3 : vector<1x16xf32> to vector<1x1x1x16xf32>
    tpu.vector_store %arg3[%c0_2, %c0_3, %c0_4, %c0_5], %6 {strides = array<i32>} : memref<1x1x1x16xf32, #tpu.memory_space<vmem>>, vector<1x1x1x16xf32>,
    %7 = arith.mulf %1, %1 : vector<512x16xf32>
    %cst_6 = arith.constant dense<0.000000e+00> : vector<16xf32>
    %8 = vector.multi_reduction <add>, %7, %cst_6 [0] : vector<512x16xf32> to vector<16xf32>
    %9 = vector.shape_cast %8 : vector<16xf32> to vector<1x16xf32>
    %c0_7 = arith.constant 0 : index
    %c0_8 = arith.constant 0 : index
    %c0_9 = arith.constant 0 : index
    %c0_10 = arith.constant 0 : index
    %10 = vector.load %arg4[%c0_7, %c0_8, %c0_9, %c0_10] : memref<1x1x1x16xf32, #tpu.memory_space<vmem>>, vector<1x1x1x16xf32>
    %11 = vector.shape_cast %10 : vector<1x1x1x16xf32> to vector<1x16xf32>
    %12 = vector.shape_cast %9 : vector<1x16xf32> to vector<1x1x1x16xf32>
    tpu.vector_store %arg4[%c0_7, %c0_8, %c0_9, %c0_10], %12 {strides = array<i32>} : memref<1x1x1x16xf32, #tpu.memory_space<vmem>>, vector<1x1x1x16xf32>,
    return
  }
  func.func @transform_0(%arg0: i32, %arg1: i32) -> (i32, i32, i32) {
    %c0_i32 = arith.constant 0 : i32
    %c0_i32_0 = arith.constant 0 : i32
    return %arg0, %arg1, %c0_i32 : i32, i32, i32
  }
  func.func @transform_1(%arg0: i32, %arg1: i32) -> (i32, i32, i32, i32) {
    %c0_i32 = arith.constant 0 : i32
    %c0_i32_0 = arith.constant 0 : i32
    %c0_i32_1 = arith.constant 0 : i32
    return %arg1, %arg0, %c0_i32, %c0_i32_0 : i32, i32, i32, i32
  }
  func.func @transform_2(%arg0: i32, %arg1: i32) -> (i32, i32, i32, i32) {
    %c0_i32 = arith.constant 0 : i32
    %c0_i32_0 = arith.constant 0 : i32
    %c0_i32_1 = arith.constant 0 : i32
    return %arg1, %arg0, %c0_i32, %c0_i32_0 : i32, i32, i32, i32
  }
}

</mosaic_0001>

<llo_original>
// kernel: tpu_custom_call.1
$region0: #{tpu_custom_call.1}
  #allocation0 [shape = 'u32[]', space=smem, size = 0x4, offset = 0x4, fixed_abs, tag = 'smem constant byte address 0x4 - core index']
  #allocation1 [shape = 'u32[144,128]{1,0:T(1,128)}', space=vmem, size = 0x12000, scoped, tag = 'internal scratch']
  %s0 = inlined_call_operand.vmem [shape: f32[2,512,16], index: 0, kind: input, shape index: {}]
  %s1 = inlined_call_operand.hbm [shape: f32[1,2,1,16], index: 1, kind: output, shape index: {0}]
  %s2 = inlined_call_operand.hbm [shape: f32[1,2,1,16], index: 2, kind: output, shape index: {1}]
  %3 = xla_tuple %s1, %s2
  %s4 = sld [smem:[#allocation0]]
  $region45: #{tpu_custom_call.1} parent=0
    _
  %s6 = ssub.s32 1, %s4
  %s7 = scalar_select 0, %s6, %s4
  $region1: #{tpu_custom_call.1} parent=0
    #allocation2 [shape = 'u8[1024]{0}', space=vmem, size = 0x400, scoped, tag = 'output window, operand 0']
    #allocation3 [shape = 's32[2]{0}', space=sflag, size = 0x8, scoped, tag = 'scoped memory for tpu_custom_call.1']
    #allocation4 [shape = 'u8[1024]{0}', space=vmem, size = 0x400, scoped, tag = 'output window, operand 1']
    #allocation5 [shape = 's32[2]{0}', space=sflag, size = 0x8, scoped, tag = 'scoped memory for tpu_custom_call.1']
    %8 = vsyncpa [#allocation3], 0
    %s9 = scalar_lea.sflag [#allocation3], 1
    %10 = vsyncpa %s9, 0
    %11 = vsyncpa [#allocation5], 0
    %s12 = scalar_lea.sflag [#allocation5], 1
    %13 = vsyncpa %s12, 0
    loop: start=0, step=1, limit=4
    $region2: #{tpu_custom_call.1} parent=1 // loop_pre_header
      _
    $region3: #{tpu_custom_call.1} parent=1 // loop_header
      %s15 = sphi 0, %s19
      %p16 = scmp.ge.s32.totalorder %s15, 4
      %s22 = sphi 0, %s34
      %s23 = sphi 0, %s30
      %s24 = sphi 0, %s22
      %s25 = sphi 0, %s23
      %s26 = sphi 0, %s24
      %s27 = sphi 0, %s25
      %s39 = sphi 0, %s41
      %s42 = sphi 0, %s39
      %s43 = sphi 0, %s42
      %s59 = sphi 0, %s43
      %s67 = sphi 0, %s69
      %s70 = sphi 0, %s67
      %s71 = sphi 0, %s70
      %s87 = sphi 0, %s71
      %s95 = sphi 0, %s97
      %s98 = sphi 0, %s95
      %s99 = sphi 0, %s98
      %s115 = sphi 0, %s99
    $region4: #{tpu_custom_call.1} parent=1 // loop_header_branch
      %18 = sbr.rel (%p16) target = $region8
    $region5: #{tpu_custom_call.1} parent=1 // loop_body
      %s20 = ssub.s32 %s15, 1
      %s21 = ssub.s32 %s15, 2
      %s28 = sadd.s32 1, %s23
      %p29 = scmp.ge.s32.totalorder %s28, 1
      %s30 = scalar_select %p29, 0, %s28
      %s31 = sadd.s32 1, %s22
      %s32 = scalar_select %p29, %s31, %s22
      %p33 = scmp.ge.s32.totalorder %s32, 2
      %s34 = scalar_select %p33, 0, %s32
      %s35 = ssub.s32 %s22, %s34
      %s36 = ssub.s32 %s23, %s30
      %s37 = sor.u32 %s35, %s36
      %p38 = scmp.eq.s32.totalorder %s37, 0
      %s40 = sadd.s32 %s39, 1
      %s41 = scalar_select %p38, %s39, %s40
      %p44 = pneg %p38
      %p45 = scmp.eq.s32.totalorder %s15, 1
      %p46 = por %p44, %p45
      %p47 = scmp.ne.s32.totalorder %s39, %s42
      %p48 = scmp.eq.s32.totalorder %s15, 0
      %p49 = por %p47, %p48
      %p50 = scmp.ne.s32.totalorder %s39, %s42
      %p51 = scmp.eq.s32.totalorder %s20, 1
      %p52 = por %p50, %p51
      %p53 = scmp.ne.s32.totalorder %s42, %s43
      %p54 = scmp.eq.s32.totalorder %s20, 0
      %p55 = por %p53, %p54
      %p56 = scmp.ne.s32.totalorder %s42, %s43
      %p57 = scmp.eq.s32.totalorder %s21, 1
      %p58 = por %p56, %p57
      %p60 = scmp.ne.s32.totalorder %s43, %s59
      %p61 = scmp.eq.s32.totalorder %s21, 0
      %p62 = por %p60, %p61
      %s63 = ssub.s32 %s23, %s30
      %s64 = ssub.s32 %s22, %s34
      %s65 = sor.u32 %s63, %s64
      %p66 = scmp.eq.s32.totalorder %s65, 0
      %s68 = sadd.s32 %s67, 1
      %s69 = scalar_select %p66, %s67, %s68
      %p72 = pneg %p66
      %p73 = scmp.eq.s32.totalorder %s15, 1
      %p74 = por %p72, %p73
      %p75 = scmp.ne.s32.totalorder %s67, %s70
      %p76 = scmp.eq.s32.totalorder %s15, 0
      %p77 = por %p75, %p76
      %p78 = scmp.ne.s32.totalorder %s67, %s70
      %p79 = scmp.eq.s32.totalorder %s20, 1
      %p80 = por %p78, %p79
      %p81 = scmp.ne.s32.totalorder %s70, %s71
      %p82 = scmp.eq.s32.totalorder %s20, 0
      %p83 = por %p81, %p82
      %p84 = scmp.ne.s32.totalorder %s70, %s71
      %p85 = scmp.eq.s32.totalorder %s21, 1
      %p86 = por %p84, %p85
      %p88 = scmp.ne.s32.totalorder %s71, %s87
      %p89 = scmp.eq.s32.totalorder %s21, 0
      %p90 = por %p88, %p89
      %s91 = ssub.s32 %s23, %s30
      %s92 = ssub.s32 %s22, %s34
      %s93 = sor.u32 %s91, %s92
      %p94 = scmp.eq.s32.totalorder %s93, 0
      %s96 = sadd.s32 %s95, 1
      %s97 = scalar_select %p94, %s95, %s96
      %p100 = pneg %p94
      %p101 = scmp.eq.s32.totalorder %s15, 1
      %p102 = por %p100, %p101
      %p103 = scmp.ne.s32.totalorder %s95, %s98
      %p104 = scmp.eq.s32.totalorder %s15, 0
      %p105 = por %p103, %p104
      %p106 = scmp.ne.s32.totalorder %s95, %s98
      %p107 = scmp.eq.s32.totalorder %s20, 1
      %p108 = por %p106, %p107
      %p109 = scmp.ne.s32.totalorder %s98, %s99
      %p110 = scmp.eq.s32.totalorder %s20, 0
      %p111 = por %p109, %p110
      %p112 = scmp.ne.s32.totalorder %s98, %s99
      %p113 = scmp.eq.s32.totalorder %s21, 1
      %p114 = por %p112, %p113
      %p116 = scmp.ne.s32.totalorder %s99, %s115
      %p117 = scmp.eq.s32.totalorder %s21, 0
      %p118 = por %p116, %p117
      %p119 = scmp.le.s32.totalorder 1, %s15
      %p120 = scmp.lt.s32.totalorder %s15, 3
      %p121 = pnand %p119, %p120
      %p122 = pneg %p121
      // Predicated region
      $region9: #{tpu_custom_call.1} parent=5 // pred_check
        _
      $region10: #{tpu_custom_call.1} parent=5 // pred_check_branch
        %124 = sbr.rel (%p121) target = $region12
      $region11: #{tpu_custom_call.1} parent=5 // pred_region
        %s125 = ssub.s32 %s15, 1
      $region12: #{tpu_custom_call.1} parent=5 // pred_fallthru
        _
      %p126 = scmp.lt.s32.totalorder %s15, 2
      // Predicated region
      $region13: #{tpu_custom_call.1} parent=5 // pred_check
        %p127 = pneg %p126
      $region14: #{tpu_custom_call.1} parent=5 // pred_check_branch
        %129 = sbr.rel (%p127) target = $region16
      $region15: #{tpu_custom_call.1} parent=5 // pred_region
        // Predicated region
        $region17: #{tpu_custom_call.1} parent=15 // pred_check
          %p130 = pneg %p49
        $region18: #{tpu_custom_call.1} parent=15 // pred_check_branch
          %132 = sbr.rel (%p130) target = $region20
        $region19: #{tpu_custom_call.1} parent=15 // pred_region
          %s133 = smul.u32 64, %s23
          %p134 = scmp.lt.s32.totalorder %s22, 1
          %s135 = scalar_select %p134, %s22, 1
          %p136 = scmp.lt.s32.totalorder %s133, 63
          %s137 = scalar_select %p136, %s133, 63
          %s138 = smul.addr %s135, 64
          %s139 = sadd.s32 %s137, %s138
          %s140 = smul.addr %s139, 8
          %s141 = scalar_lea.vmem %s0, %s140
          %s142 = smul.u32 64, %s23
        $region20: #{tpu_custom_call.1} parent=15 // pred_fallthru
          _
      $region16: #{tpu_custom_call.1} parent=5 // pred_fallthru
        _
      %p143 = scmp.le.s32.totalorder 1, %s15
      %p144 = scmp.lt.s32.totalorder %s15, 3
      %p145 = pnand %p143, %p144
      %p146 = pneg %p145
      // Predicated region
      $region21: #{tpu_custom_call.1} parent=5 // pred_check
        _
      $region22: #{tpu_custom_call.1} parent=5 // pred_check_branch
        %148 = sbr.rel (%p145) target = $region24
      $region23: #{tpu_custom_call.1} parent=5 // pred_region
        %s149 = ssub.s32 %s15, 1
        %s150 = smul.u32 64, %s25
        %p151 = scmp.lt.s32.totalorder %s24, 1
        %s152 = scalar_select %p151, %s24, 1
        %p153 = scmp.lt.s32.totalorder %s150, 63
        %s154 = scalar_select %p153, %s150, 63
        %s155 = smul.addr %s152, 64
        %s156 = sadd.s32 %s154, %s155
        %s157 = smul.addr %s156, 8
        %s158 = scalar_lea.vmem %s0, %s157
        %p159 = pneg %p55
        %p160 = pneg %p52
        %p161 = pneg %p83
        %p162 = pneg %p80
        %s163 = sand.u32 %s70, 1
        %s164 = scalar_lea.sflag [#allocation3], %s163
        %s165 = sand.u32 %s70, 1
        %s166 = scalar_lea.vmem [#allocation2], %s165
        %p167 = pneg %p111
        %p168 = pneg %p108
        %s169 = sand.u32 %s98, 1
        %s170 = scalar_lea.sflag [#allocation5], %s169
        %s171 = sand.u32 %s98, 1
        %s172 = scalar_lea.vmem [#allocation4], %s171
        %s173 = smul.u32 64, %s25
        %p174 = scmp.lt.s32.totalorder %s24, 1
        %s175 = scalar_select %p174, %s24, 1
        %p176 = scmp.lt.s32.totalorder %s173, 63
        %s177 = scalar_select %p176, %s173, 63
        %s178 = smul.addr %s175, 64
        %s179 = sadd.s32 %s177, %s178
        %s180 = smul.addr %s179, 8
        %s181 = scalar_lea.vmem %s0, %s180
        %s182 = smul.u32 64, %s25
        %v183 = vld [vmem:[%s181] sm:$0xff]
        %v184 = vld [vmem:[%s181 + $0x8] sm:$0xff]
        %v185 = vld [vmem:[%s181 + $0x10] sm:$0xff]
        %v186 = vld [vmem:[%s181 + $0x18] sm:$0xff]
        %v187 = vld [vmem:[%s181 + $0x20] sm:$0xff]
        %v188 = vld [vmem:[%s181 + $0x28] sm:$0xff]
        %v189 = vld [vmem:[%s181 + $0x30] sm:$0xff]
        %v190 = vld [vmem:[%s181 + $0x38] sm:$0xff]
        %v191 = vld [vmem:[%s181 + $0x40] sm:$0xff]
        %v192 = vld [vmem:[%s181 + $0x48] sm:$0xff]
        %v193 = vld [vmem:[%s181 + $0x50] sm:$0xff]
        %v194 = vld [vmem:[%s181 + $0x58] sm:$0xff]
        %v195 = vld [vmem:[%s181 + $0x60] sm:$0xff]
        %v196 = vld [vmem:[%s181 + $0x68] sm:$0xff]
        %v197 = vld [vmem:[%s181 + $0x70] sm:$0xff]
        %v198 = vld [vmem:[%s181 + $0x78] sm:$0xff]
        %v199 = vld [vmem:[%s181 + $0x80] sm:$0xff]
        %v200 = vld [vmem:[%s181 + $0x88] sm:$0xff]
        %v201 = vld [vmem:[%s181 + $0x90] sm:$0xff]
        %v202 = vld [vmem:[%s181 + $0x98] sm:$0xff]
        %v203 = vld [vmem:[%s181 + $0xa0] sm:$0xff]
        %v204 = vld [vmem:[%s181 + $0xa8] sm:$0xff]
        %v205 = vld [vmem:[%s181 + $0xb0] sm:$0xff]
        %v206 = vld [vmem:[%s181 + $0xb8] sm:$0xff]
        %v207 = vld [vmem:[%s181 + $0xc0] sm:$0xff]
        %v208 = vld [vmem:[%s181 + $0xc8] sm:$0xff]
        %v209 = vld [vmem:[%s181 + $0xd0] sm:$0xff]
        %v210 = vld [vmem:[%s181 + $0xd8] sm:$0xff]
        %v211 = vld [vmem:[%s181 + $0xe0] sm:$0xff]
        %v212 = vld [vmem:[%s181 + $0xe8] sm:$0xff]
        %v213 = vld [vmem:[%s181 + $0xf0] sm:$0xff]
        %v214 = vld [vmem:[%s181 + $0xf8] sm:$0xff]
        %v215 = vld [vmem:[%s181 + $0x100] sm:$0xff]
        %v216 = vld [vmem:[%s181 + $0x108] sm:$0xff]
        %v217 = vld [vmem:[%s181 + $0x110] sm:$0xff]
        %v218 = vld [vmem:[%s181 + $0x118] sm:$0xff]
        %v219 = vld [vmem:[%s181 + $0x120] sm:$0xff]
        %v220 = vld [vmem:[%s181 + $0x128] sm:$0xff]
        %v221 = vld [vmem:[%s181 + $0x130] sm:$0xff]
        %v222 = vld [vmem:[%s181 + $0x138] sm:$0xff]
        %v223 = vld [vmem:[%s181 + $0x140] sm:$0xff]
        %v224 = vld [vmem:[%s181 + $0x148] sm:$0xff]
        %v225 = vld [vmem:[%s181 + $0x150] sm:$0xff]
        %v226 = vld [vmem:[%s181 + $0x158] sm:$0xff]
        %v227 = vld [vmem:[%s181 + $0x160] sm:$0xff]
        %v228 = vld [vmem:[%s181 + $0x168] sm:$0xff]
        %v229 = vld [vmem:[%s181 + $0x170] sm:$0xff]
        %v230 = vld [vmem:[%s181 + $0x178] sm:$0xff]
        %v231 = vld [vmem:[%s181 + $0x180] sm:$0xff]
        %v232 = vld [vmem:[%s181 + $0x188] sm:$0xff]
        %v233 = vld [vmem:[%s181 + $0x190] sm:$0xff]
        %v234 = vld [vmem:[%s181 + $0x198] sm:$0xff]
        %v235 = vld [vmem:[%s181 + $0x1a0] sm:$0xff]
        %v236 = vld [vmem:[%s181 + $0x1a8] sm:$0xff]
        %v237 = vld [vmem:[%s181 + $0x1b0] sm:$0xff]
        %v238 = vld [vmem:[%s181 + $0x1b8] sm:$0xff]
        %v239 = vld [vmem:[%s181 + $0x1c0] sm:$0xff]
        %v240 = vld [vmem:[%s181 + $0x1c8] sm:$0xff]
        %v241 = vld [vmem:[%s181 + $0x1d0] sm:$0xff]
        %v242 = vld [vmem:[%s181 + $0x1d8] sm:$0xff]
        %v243 = vld [vmem:[%s181 + $0x1e0] sm:$0xff]
        %v244 = vld [vmem:[%s181 + $0x1e8] sm:$0xff]
        %v245 = vld [vmem:[%s181 + $0x1f0] sm:$0xff]
        %v246 = vld [vmem:[%s181 + $0x1f8] sm:$0xff]
        %vm247 = vcmask 130048
        %v248 = vsel %vm247, %v183, 0.0
        %v249 = vsel %vm247, %v184, 0.0
        %v250 = vadd.f32 %v248, %v249
        %v251 = vsel %vm247, %v185, 0.0
        %v252 = vadd.f32 %v250, %v251
        %v253 = vsel %vm247, %v186, 0.0
        %v254 = vadd.f32 %v252, %v253
        %v255 = vsel %vm247, %v187, 0.0
        %v256 = vadd.f32 %v254, %v255
        %v257 = vsel %vm247, %v188, 0.0
        %v258 = vadd.f32 %v256, %v257
        %v259 = vsel %vm247, %v189, 0.0
        %v260 = vadd.f32 %v258, %v259
        %v261 = vsel %vm247, %v190, 0.0
        %v262 = vadd.f32 %v260, %v261
        %v263 = vsel %vm247, %v191, 0.0
        %v264 = vadd.f32 %v262, %v263
        %v265 = vsel %vm247, %v192, 0.0
        %v266 = vadd.f32 %v264, %v265
        %v267 = vsel %vm247, %v193, 0.0
        %v268 = vadd.f32 %v266, %v267
        %v269 = vsel %vm247, %v194, 0.0
        %v270 = vadd.f32 %v268, %v269
        %v271 = vsel %vm247, %v195, 0.0
        %v272 = vadd.f32 %v270, %v271
        %v273 = vsel %vm247, %v196, 0.0
        %v274 = vadd.f32 %v272, %v273
        %v275 = vsel %vm247, %v197, 0.0
        %v276 = vadd.f32 %v274, %v275
        %v277 = vsel %vm247, %v198, 0.0
        %v278 = vadd.f32 %v276, %v277
        %v279 = vsel %vm247, %v199, 0.0
        %v280 = vadd.f32 %v278, %v279
        %v281 = vsel %vm247, %v200, 0.0
        %v282 = vadd.f32 %v280, %v281
        %v283 = vsel %vm247, %v201, 0.0
        %v284 = vadd.f32 %v282, %v283
        %v285 = vsel %vm247, %v202, 0.0
        %v286 = vadd.f32 %v284, %v285
        %v287 = vsel %vm247, %v203, 0.0
        %v288 = vadd.f32 %v286, %v287
        %v289 = vsel %vm247, %v204, 0.0
        %v290 = vadd.f32 %v288, %v289
        %v291 = vsel %vm247, %v205, 0.0
        %v292 = vadd.f32 %v290, %v291
        %v293 = vsel %vm247, %v206, 0.0
        %v294 = vadd.f32 %v292, %v293
        %v295 = vsel %vm247, %v207, 0.0
        %v296 = vadd.f32 %v294, %v295
        %v297 = vsel %vm247, %v208, 0.0
        %v298 = vadd.f32 %v296, %v297
        %v299 = vsel %vm247, %v209, 0.0
        %v300 = vadd.f32 %v298, %v299
        %v301 = vsel %vm247, %v210, 0.0
        %v302 = vadd.f32 %v300, %v301
        %v303 = vsel %vm247, %v211, 0.0
        %v304 = vadd.f32 %v302, %v303
        %v305 = vsel %vm247, %v212, 0.0
        %v306 = vadd.f32 %v304, %v305
        %v307 = vsel %vm247, %v213, 0.0
        %v308 = vadd.f32 %v306, %v307
        %v309 = vsel %vm247, %v214, 0.0
        %v310 = vadd.f32 %v308, %v309
        %v311 = vsel %vm247, %v215, 0.0
        %v312 = vadd.f32 %v310, %v311
        %v313 = vsel %vm247, %v216, 0.0
        %v314 = vadd.f32 %v312, %v313
        %v315 = vsel %vm247, %v217, 0.0
        %v316 = vadd.f32 %v314, %v315
        %v317 = vsel %vm247, %v218, 0.0
        %v318 = vadd.f32 %v316, %v317
        %v319 = vsel %vm247, %v219, 0.0
        %v320 = vadd.f32 %v318, %v319
        %v321 = vsel %vm247, %v220, 0.0
        %v322 = vadd.f32 %v320, %v321
        %v323 = vsel %vm247, %v221, 0.0
        %v324 = vadd.f32 %v322, %v323
        %v325 = vsel %vm247, %v222, 0.0
        %v326 = vadd.f32 %v324, %v325
        %v327 = vsel %vm247, %v223, 0.0
        %v328 = vadd.f32 %v326, %v327
        %v329 = vsel %vm247, %v224, 0.0
        %v330 = vadd.f32 %v328, %v329
        %v331 = vsel %vm247, %v225, 0.0
        %v332 = vadd.f32 %v330, %v331
        %v333 = vsel %vm247, %v226, 0.0
        %v334 = vadd.f32 %v332, %v333
        %v335 = vsel %vm247, %v227, 0.0
        %v336 = vadd.f32 %v334, %v335
        %v337 = vsel %vm247, %v228, 0.0
        %v338 = vadd.f32 %v336, %v337
        %v339 = vsel %vm247, %v229, 0.0
        %v340 = vadd.f32 %v338, %v339
        %v341 = vsel %vm247, %v230, 0.0
        %v342 = vadd.f32 %v340, %v341
        %v343 = vsel %vm247, %v231, 0.0
        %v344 = vadd.f32 %v342, %v343
        %v345 = vsel %vm247, %v232, 0.0
        %v346 = vadd.f32 %v344, %v345
        %v347 = vsel %vm247, %v233, 0.0
        %v348 = vadd.f32 %v346, %v347
        %v349 = vsel %vm247, %v234, 0.0
        %v350 = vadd.f32 %v348, %v349
        %v351 = vsel %vm247, %v235, 0.0
        %v352 = vadd.f32 %v350, %v351
        %v353 = vsel %vm247, %v236, 0.0
        %v354 = vadd.f32 %v352, %v353
        %v355 = vsel %vm247, %v237, 0.0
        %v356 = vadd.f32 %v354, %v355
        %v357 = vsel %vm247, %v238, 0.0
        %v358 = vadd.f32 %v356, %v357
        %v359 = vsel %vm247, %v239, 0.0
        %v360 = vadd.f32 %v358, %v359
        %v361 = vsel %vm247, %v240, 0.0
        %v362 = vadd.f32 %v360, %v361
        %v363 = vsel %vm247, %v241, 0.0
        %v364 = vadd.f32 %v362, %v363
        %v365 = vsel %vm247, %v242, 0.0
        %v366 = vadd.f32 %v364, %v365
        %v367 = vsel %vm247, %v243, 0.0
        %v368 = vadd.f32 %v366, %v367
        %v369 = vsel %vm247, %v244, 0.0
        %v370 = vadd.f32 %v368, %v369
        %v371 = vsel %vm247, %v245, 0.0
        %v372 = vadd.f32 %v370, %v371
        %v373 = vsel %vm247, %v246, 0.0
        %v374 = vadd.f32 %v372, %v373
        %v375 = vrot.slane %v374, 4
        %v376 = vadd.f32 %v374, %v375
        %v377 = vrot.slane %v376, 2
        %v378 = vadd.f32 %v376, %v377
        %v379 = vrot.slane %v378, 1
        %v380 = vadd.f32 %v378, %v379
        %vm381 = vcmask 122880
        %382 = vst.msk [vmem:[%s166] sm:$0x1] %vm381, %v380
        %v383 = vmul.f32 %v183, %v183
        %v384 = vmul.f32 %v184, %v184
        %v385 = vmul.f32 %v185, %v185
        %v386 = vmul.f32 %v186, %v186
        %v387 = vmul.f32 %v187, %v187
        %v388 = vmul.f32 %v188, %v188
        %v389 = vmul.f32 %v189, %v189
        %v390 = vmul.f32 %v190, %v190
        %v391 = vmul.f32 %v191, %v191
        %v392 = vmul.f32 %v192, %v192
        %v393 = vmul.f32 %v193, %v193
        %v394 = vmul.f32 %v194, %v194
        %v395 = vmul.f32 %v195, %v195
        %v396 = vmul.f32 %v196, %v196
        %v397 = vmul.f32 %v197, %v197
        %v398 = vmul.f32 %v198, %v198
        %v399 = vmul.f32 %v199, %v199
        %v400 = vmul.f32 %v200, %v200
        %v401 = vmul.f32 %v201, %v201
        %v402 = vmul.f32 %v202, %v202
        %v403 = vmul.f32 %v203, %v203
        %v404 = vmul.f32 %v204, %v204
        %v405 = vmul.f32 %v205, %v205
        %v406 = vmul.f32 %v206, %v206
        %v407 = vmul.f32 %v207, %v207
        %v408 = vmul.f32 %v208, %v208
        %v409 = vmul.f32 %v209, %v209
        %v410 = vmul.f32 %v210, %v210
        %v411 = vmul.f32 %v211, %v211
        %v412 = vmul.f32 %v212, %v212
        %v413 = vmul.f32 %v213, %v213
        %v414 = vmul.f32 %v214, %v214
        %v415 = vmul.f32 %v215, %v215
        %v416 = vmul.f32 %v216, %v216
        %v417 = vmul.f32 %v217, %v217
        %v418 = vmul.f32 %v218, %v218
        %v419 = vmul.f32 %v219, %v219
        %v420 = vmul.f32 %v220, %v220
        %v421 = vmul.f32 %v221, %v221
        %v422 = vmul.f32 %v222, %v222
        %v423 = vmul.f32 %v223, %v223
        %v424 = vmul.f32 %v224, %v224
        %v425 = vmul.f32 %v225, %v225
        %v426 = vmul.f32 %v226, %v226
        %v427 = vmul.f32 %v227, %v227
        %v428 = vmul.f32 %v228, %v228
        %v429 = vmul.f32 %v229, %v229
        %v430 = vmul.f32 %v230, %v230
        %v431 = vmul.f32 %v231, %v231
        %v432 = vmul.f32 %v232, %v232
        %v433 = vmul.f32 %v233, %v233
        %v434 = vmul.f32 %v234, %v234
        %v435 = vmul.f32 %v235, %v235
        %v436 = vmul.f32 %v236, %v236
        %v437 = vmul.f32 %v237, %v237
        %v438 = vmul.f32 %v238, %v238
        %v439 = vmul.f32 %v239, %v239
        %v440 = vmul.f32 %v240, %v240
        %v441 = vmul.f32 %v241, %v241
        %v442 = vmul.f32 %v242, %v242
        %v443 = vmul.f32 %v243, %v243
        %v444 = vmul.f32 %v244, %v244
        %v445 = vmul.f32 %v245, %v245
        %v446 = vmul.f32 %v246, %v246
        %v447 = vsel %vm247, %v383, 0.0
        %v448 = vsel %vm247, %v384, 0.0
        %v449 = vadd.f32 %v447, %v448
        %v450 = vsel %vm247, %v385, 0.0
        %v451 = vadd.f32 %v449, %v450
        %v452 = vsel %vm247, %v386, 0.0
        %v453 = vadd.f32 %v451, %v452
        %v454 = vsel %vm247, %v387, 0.0
        %v455 = vadd.f32 %v453, %v454
        %v456 = vsel %vm247, %v388, 0.0
        %v457 = vadd.f32 %v455, %v456
        %v458 = vsel %vm247, %v389, 0.0
        %v459 = vadd.f32 %v457, %v458
        %v460 = vsel %vm247, %v390, 0.0
        %v461 = vadd.f32 %v459, %v460
        %v462 = vsel %vm247, %v391, 0.0
        %v463 = vadd.f32 %v461, %v462
        %v464 = vsel %vm247, %v392, 0.0
        %v465 = vadd.f32 %v463, %v464
        %v466 = vsel %vm247, %v393, 0.0
        %v467 = vadd.f32 %v465, %v466
        %v468 = vsel %vm247, %v394, 0.0
        %v469 = vadd.f32 %v467, %v468
        %v470 = vsel %vm247, %v395, 0.0
        %v471 = vadd.f32 %v469, %v470
        %v472 = vsel %vm247, %v396, 0.0
        %v473 = vadd.f32 %v471, %v472
        %v474 = vsel %vm247, %v397, 0.0
        %v475 = vadd.f32 %v473, %v474
        %v476 = vsel %vm247, %v398, 0.0
        %v477 = vadd.f32 %v475, %v476
        %v478 = vsel %vm247, %v399, 0.0
        %v479 = vadd.f32 %v477, %v478
        %v480 = vsel %vm247, %v400, 0.0
        %v481 = vadd.f32 %v479, %v480
        %v482 = vsel %vm247, %v401, 0.0
        %v483 = vadd.f32 %v481, %v482
        %v484 = vsel %vm247, %v402, 0.0
        %v485 = vadd.f32 %v483, %v484
        %v486 = vsel %vm247, %v403, 0.0
        %v487 = vadd.f32 %v485, %v486
        %v488 = vsel %vm247, %v404, 0.0
        %v489 = vadd.f32 %v487, %v488
        %v490 = vsel %vm247, %v405, 0.0
        %v491 = vadd.f32 %v489, %v490
        %v492 = vsel %vm247, %v406, 0.0
        %v493 = vadd.f32 %v491, %v492
        %v494 = vsel %vm247, %v407, 0.0
        %v495 = vadd.f32 %v493, %v494
        %v496 = vsel %vm247, %v408, 0.0
        %v497 = vadd.f32 %v495, %v496
        %v498 = vsel %vm247, %v409, 0.0
        %v499 = vadd.f32 %v497, %v498
        %v500 = vsel %vm247, %v410, 0.0
        %v501 = vadd.f32 %v499, %v500
        %v502 = vsel %vm247, %v411, 0.0
        %v503 = vadd.f32 %v501, %v502
        %v504 = vsel %vm247, %v412, 0.0
        %v505 = vadd.f32 %v503, %v504
        %v506 = vsel %vm247, %v413, 0.0
        %v507 = vadd.f32 %v505, %v506
        %v508 = vsel %vm247, %v414, 0.0
        %v509 = vadd.f32 %v507, %v508
        %v510 = vsel %vm247, %v415, 0.0
        %v511 = vadd.f32 %v509, %v510
        %v512 = vsel %vm247, %v416, 0.0
        %v513 = vadd.f32 %v511, %v512
        %v514 = vsel %vm247, %v417, 0.0
        %v515 = vadd.f32 %v513, %v514
        %v516 = vsel %vm247, %v418, 0.0
        %v517 = vadd.f32 %v515, %v516
        %v518 = vsel %vm247, %v419, 0.0
        %v519 = vadd.f32 %v517, %v518
        %v520 = vsel %vm247, %v420, 0.0
        %v521 = vadd.f32 %v519, %v520
        %v522 = vsel %vm247, %v421, 0.0
        %v523 = vadd.f32 %v521, %v522
        %v524 = vsel %vm247, %v422, 0.0
        %v525 = vadd.f32 %v523, %v524
        %v526 = vsel %vm247, %v423, 0.0
        %v527 = vadd.f32 %v525, %v526
        %v528 = vsel %vm247, %v424, 0.0
        %v529 = vadd.f32 %v527, %v528
        %v530 = vsel %vm247, %v425, 0.0
        %v531 = vadd.f32 %v529, %v530
        %v532 = vsel %vm247, %v426, 0.0
        %v533 = vadd.f32 %v531, %v532
        %v534 = vsel %vm247, %v427, 0.0
        %v535 = vadd.f32 %v533, %v534
        %v536 = vsel %vm247, %v428, 0.0
        %v537 = vadd.f32 %v535, %v536
        %v538 = vsel %vm247, %v429, 0.0
        %v539 = vadd.f32 %v537, %v538
        %v540 = vsel %vm247, %v430, 0.0
        %v541 = vadd.f32 %v539, %v540
        %v542 = vsel %vm247, %v431, 0.0
        %v543 = vadd.f32 %v541, %v542
        %v544 = vsel %vm247, %v432, 0.0
        %v545 = vadd.f32 %v543, %v544
        %v546 = vsel %vm247, %v433, 0.0
        %v547 = vadd.f32 %v545, %v546
        %v548 = vsel %vm247, %v434, 0.0
        %v549 = vadd.f32 %v547, %v548
        %v550 = vsel %vm247, %v435, 0.0
        %v551 = vadd.f32 %v549, %v550
        %v552 = vsel %vm247, %v436, 0.0
        %v553 = vadd.f32 %v551, %v552
        %v554 = vsel %vm247, %v437, 0.0
        %v555 = vadd.f32 %v553, %v554
        %v556 = vsel %vm247, %v438, 0.0
        %v557 = vadd.f32 %v555, %v556
        %v558 = vsel %vm247, %v439, 0.0
        %v559 = vadd.f32 %v557, %v558
        %v560 = vsel %vm247, %v440, 0.0
        %v561 = vadd.f32 %v559, %v560
        %v562 = vsel %vm247, %v441, 0.0
        %v563 = vadd.f32 %v561, %v562
        %v564 = vsel %vm247, %v442, 0.0
        %v565 = vadd.f32 %v563, %v564
        %v566 = vsel %vm247, %v443, 0.0
        %v567 = vadd.f32 %v565, %v566
        %v568 = vsel %vm247, %v444, 0.0
        %v569 = vadd.f32 %v567, %v568
        %v570 = vsel %vm247, %v445, 0.0
        %v571 = vadd.f32 %v569, %v570
        %v572 = vsel %vm247, %v446, 0.0
        %v573 = vadd.f32 %v571, %v572
        %v574 = vrot.slane %v573, 4
        %v575 = vadd.f32 %v573, %v574
        %v576 = vrot.slane %v575, 2
        %v577 = vadd.f32 %v575, %v576
        %v578 = vrot.slane %v577, 1
        %v579 = vadd.f32 %v577, %v578
        %580 = vst.msk [vmem:[%s172] sm:$0x1] %vm381, %v579
        %s581 = sand.u32 %s70, 1
        %s582 = scalar_lea.sflag [#allocation3], %s581
        %s583 = sand.u32 %s70, 1
        %s584 = scalar_lea.vmem [#allocation2], %s583
        %s585 = sand.u32 %s98, 1
        %s586 = scalar_lea.sflag [#allocation5], %s585
        %s587 = sand.u32 %s98, 1
        %s588 = scalar_lea.vmem [#allocation4], %s587
        // Predicated region
        $region25: #{tpu_custom_call.1} parent=23 // pred_check
          %p589 = pneg %p80
        $region26: #{tpu_custom_call.1} parent=23 // pred_check_branch
          %591 = sbr.rel (%p589) target = $region28
        $region27: #{tpu_custom_call.1} parent=23 // pred_region
          %s593 = ssub.s32 16, 16
          %594 = vsyncadd %s582, %s593
          %s595 = smul.addr %s25, 2
          %s596 = sadd.s32 %s24, %s595
          %s597 = smul.addr %s596, 16
          %s598 = scalar_lea.hbm %s1, %s597
          %s600 = sshll.u32 %s584, 4
          %s601 = int_to_ptr.vmem [resolvable:$true] %s600
          %603 = dma.vmem_to_hbm [thread:$0]  %s601, 16, %s598, %s582
        $region28: #{tpu_custom_call.1} parent=23 // pred_fallthru
          _
        // Predicated region
        $region29: #{tpu_custom_call.1} parent=23 // pred_check
          %p604 = pneg %p108
        $region30: #{tpu_custom_call.1} parent=23 // pred_check_branch
          %606 = sbr.rel (%p604) target = $region32
        $region31: #{tpu_custom_call.1} parent=23 // pred_region
          %s608 = ssub.s32 16, 16
          %609 = vsyncadd %s586, %s608
          %s610 = smul.addr %s25, 2
          %s611 = sadd.s32 %s24, %s610
          %s612 = smul.addr %s611, 16
          %s613 = scalar_lea.hbm %s2, %s612
          %s615 = sshll.u32 %s588, 4
          %s616 = int_to_ptr.vmem [resolvable:$true] %s615
          %618 = dma.vmem_to_hbm [thread:$0]  %s616, 16, %s613, %s586
        $region32: #{tpu_custom_call.1} parent=23 // pred_fallthru
          _
      $region24: #{tpu_custom_call.1} parent=5 // pred_fallthru
        _
      %p619 = scmp.le.s32.totalorder 2, %s15
      // Predicated region
      $region33: #{tpu_custom_call.1} parent=5 // pred_check
        %p620 = pneg %p619
      $region34: #{tpu_custom_call.1} parent=5 // pred_check_branch
        %622 = sbr.rel (%p620) target = $region36
      $region35: #{tpu_custom_call.1} parent=5 // pred_region
        %s623 = ssub.s32 %s15, 2
        // Predicated region
        $region37: #{tpu_custom_call.1} parent=35 // pred_check
          %p624 = pneg %p86
        $region38: #{tpu_custom_call.1} parent=35 // pred_check_branch
          %626 = sbr.rel (%p624) target = $region40
        $region39: #{tpu_custom_call.1} parent=35 // pred_region
          %s627 = sand.u32 %s71, 1
          %s628 = scalar_lea.sflag [#allocation3], %s627
          %s629 = sand.u32 %s71, 1
          %s630 = scalar_lea.vmem [#allocation2], %s629
          %631 = dma.done %s628, 16
        $region40: #{tpu_custom_call.1} parent=35 // pred_fallthru
          _
        // Predicated region
        $region41: #{tpu_custom_call.1} parent=35 // pred_check
          %p632 = pneg %p114
        $region42: #{tpu_custom_call.1} parent=35 // pred_check_branch
          %634 = sbr.rel (%p632) target = $region44
        $region43: #{tpu_custom_call.1} parent=35 // pred_region
          %s635 = sand.u32 %s99, 1
          %s636 = scalar_lea.sflag [#allocation5], %s635
          %s637 = sand.u32 %s99, 1
          %s638 = scalar_lea.vmem [#allocation4], %s637
          %639 = dma.done %s636, 16
        $region44: #{tpu_custom_call.1} parent=35 // pred_fallthru
          _
      $region36: #{tpu_custom_call.1} parent=5 // pred_fallthru
        _
    $region6: #{tpu_custom_call.1} parent=1 // loop_footer
      %s19 = sadd.s32 1, %s15
    $region7: #{tpu_custom_call.1} parent=1 // loop_footer_branch
      %14 = sbr.rel target = $region3
    $region8: #{tpu_custom_call.1} parent=1 // loop_exit
      _
    %640 = vsyncpa [#allocation3], 1
    %s641 = scalar_lea.sflag [#allocation3], 1
    %642 = vsyncpa %s641, 1
    %643 = vsyncpa [#allocation5], 1
    %s644 = scalar_lea.sflag [#allocation5], 1
    %645 = vsyncpa %s644, 1

</llo_original>
